<compile_context>
chip_gen: v7x
topology: tpu7x:2x2x1
jax: 0.10.0
libtpu: 0.0.40
codegen_flags: <defaults>
</compile_context>

<pallas_src>
import functools

import jax
import jax.numpy as jnp
from jax.experimental import pallas as pl
from jax.experimental.pallas import tpu as pltpu


def _pooling_kernel(h_ref, m_ref, o_ref, max_acc, sum_acc, cnt_acc, *,
                    do_cls, do_max, do_mean, do_sqrt,
                    cls_col, max_col, avg_col):
    """One (Bt, St, H) block of masked pooling.

    h_ref: (Bt, St, H) token embeddings block
    m_ref: (Bt, St, 1) attention-mask block (sublane-aligned)
    o_ref: (Bt, n_out, H) pooled output block (resident across the S axis)
    """
    s_idx = pl.program_id(1)
    n_s = pl.num_programs(1)

    # Per-S-chunk cast: the block is small, so the f32 live set stays in vregs.
    h = h_ref[...].astype(jnp.float32)      # (Bt, St, H)
    m = m_ref[...].astype(jnp.float32)      # (Bt, St, 1)

    @pl.when(s_idx == 0)
    def _init():
        if do_max:
            max_acc[...] = jnp.full(max_acc.shape, -jnp.inf, max_acc.dtype)
        if do_mean or do_sqrt:
            sum_acc[...] = jnp.zeros(sum_acc.shape, sum_acc.dtype)
            cnt_acc[...] = jnp.zeros(cnt_acc.shape, cnt_acc.dtype)
        if do_cls:
            # CLS token is global sequence position 0 => only in the first block.
            o_ref[:, cls_col:cls_col + 1, :] = h[:, 0:1, :].astype(o_ref.dtype)

    if do_max:
        # masked positions -> -1e9 (matches the torch in-place fill), then max.
        h_masked = jnp.where(m == 0.0, jnp.float32(-1e9), h)
        max_acc[...] = jnp.maximum(max_acc[...], jnp.max(h_masked, axis=1))

    if do_mean or do_sqrt:
        sum_acc[...] += jnp.sum(h * m, axis=1)          # (Bt, H)
        cnt_acc[...] += jnp.sum(m, axis=1)              # (Bt, 1)

    @pl.when(s_idx == n_s - 1)
    def _finalize():
        if do_max:
            o_ref[:, max_col:max_col + 1, :] = (
                max_acc[...][:, None, :].astype(o_ref.dtype))
        if do_mean or do_sqrt:
            denom = jnp.maximum(cnt_acc[...], jnp.float32(1e-9))   # (Bt, 1)
            if do_mean:                                  # torch: mean has priority
                pooled = sum_acc[...] / denom
            else:
                pooled = sum_acc[...] / jnp.sqrt(denom)
            o_ref[:, avg_col:avg_col + 1, :] = (
                pooled[:, None, :].astype(o_ref.dtype))


def _pick_block(n, candidates):
    for c in candidates:
        if c <= n and n % c == 0:
            return c
    return n


def sentence_encoder_pooling(token_embeddings, attention_mask, *,
                             do_cls_tokens=False, do_max_tokens=False,
                             do_sqrt_tokens=False, do_mean_tokens=True,
                             block_b=None, block_s=None, out_dtype=None):
    """JAX/Pallas equivalent of SentenceEncoderPooling.forward.

    token_embeddings: (B, S, H)  (== hidden_states[0] in the torch module)
    attention_mask:   (B, S)
    returns:          (B, n_out * H), concat order [cls | max | mean-or-sqrt].
    """
    B, S, H = token_embeddings.shape
    if not (do_cls_tokens or do_max_tokens or do_sqrt_tokens or do_mean_tokens):
        raise ValueError("at least one pooling mode must be enabled")

    out_dtype = token_embeddings.dtype if out_dtype is None else out_dtype

    # Static column layout of the concatenated output (torch append order).
    # Note: if both mean and sqrt are requested, torch's forward appends only
    # the mean-pooled tensor (mean takes priority in the if/else).
    col = 0
    cls_col = max_col = avg_col = 0
    if do_cls_tokens:
        cls_col = col
        col += 1
    if do_max_tokens:
        max_col = col
        col += 1
    if do_mean_tokens or do_sqrt_tokens:
        avg_col = col
        col += 1
    n_out = col

    if block_b is None:
        block_b = _pick_block(B, (8, 4, 2, 1))
    if block_s is None:
        block_s = _pick_block(S, (512, 256, 128, 64, 32, 16, 8))
    assert B % block_b == 0, (B, block_b)
    assert S % block_s == 0, (S, block_s)

    # Mask presented sublane-aligned so the broadcast over H is a lane splat.
    mask3 = attention_mask.reshape(B, S, 1)

    kernel = functools.partial(
        _pooling_kernel,
        do_cls=do_cls_tokens, do_max=do_max_tokens,
        do_mean=do_mean_tokens, do_sqrt=do_sqrt_tokens,
        cls_col=cls_col, max_col=max_col, avg_col=avg_col)

    grid_spec = pltpu.PrefetchScalarGridSpec(
        num_scalar_prefetch=0,
        grid=(B // block_b, S // block_s),
        in_specs=[
            pl.BlockSpec((block_b, block_s, H), lambda b, s: (b, s, 0)),
            pl.BlockSpec((block_b, block_s, 1), lambda b, s: (b, s, 0)),
        ],
        out_specs=pl.BlockSpec((block_b, n_out, H), lambda b, s: (b, 0, 0)),
        scratch_shapes=[
            pltpu.VMEM((block_b, H), jnp.float32),   # running max
            pltpu.VMEM((block_b, H), jnp.float32),   # masked sum
            pltpu.VMEM((block_b, 1), jnp.float32),   # mask count
        ],
    )

    out3 = pl.pallas_call(
        kernel,
        out_shape=jax.ShapeDtypeStruct((B, n_out, H), out_dtype),
        grid_spec=grid_spec,
        compiler_params=pltpu.CompilerParams(
            dimension_semantics=("parallel", "arbitrary")),
    )(token_embeddings, mask3)

    # Lane-dense (B, n_out, H) kernel output -> torch's (B, n_out*H) concat.
    return out3.reshape(B, n_out * H)


def _reference(token_embeddings, attention_mask, *, do_cls, do_max,
               do_sqrt, do_mean):
    """Pure-JAX reference of SentenceEncoderPooling.forward."""
    tok = token_embeddings.astype(jnp.float32)
    m = attention_mask.astype(jnp.float32)[:, :, None]
    outs = []
    if do_cls:
        outs.append(tok[:, 0, :])
    if do_max:
        outs.append(jnp.max(jnp.where(m == 0.0, jnp.float32(-1e9), tok), axis=1))
    if do_mean or do_sqrt:
        s = jnp.sum(tok * m, axis=1)
        d = jnp.maximum(jnp.sum(m, axis=1), 1e-9)
        outs.append(s / d if do_mean else s / jnp.sqrt(d))
    return jnp.concatenate(outs, axis=1)


if __name__ == "__main__":
    key = jax.random.PRNGKey(0)

    # --- test 1: module defaults (mean pooling), small shapes ---------------
    B, S, H = 2, 8, 32
    k1, k2, k3, k4 = jax.random.split(key, 4)
    tok = jax.random.normal(k1, (B, S, H), dtype=jnp.float32)
    lengths = jnp.array([8, 5], dtype=jnp.int32)
    mask = (jnp.arange(S)[None, :] < lengths[:, None]).astype(jnp.float32)

    out = sentence_encoder_pooling(tok, mask,
                                   do_cls_tokens=False, do_max_tokens=False,
                                   do_sqrt_tokens=False, do_mean_tokens=True)
    out = jax.block_until_ready(out)
    ref = _reference(tok, mask, do_cls=False, do_max=False,
                     do_sqrt=False, do_mean=True)
    assert out.shape == (B, H), out.shape
    assert jnp.allclose(out, ref, atol=1e-5, rtol=1e-5)

    # --- test 2: all pooling heads, multi-block S grid (exercise pipeline) --
    B2, S2, H2 = 4, 256, 128
    tok2 = jax.random.normal(k3, (B2, S2, H2), dtype=jnp.float32)
    lengths2 = jnp.array([256, 200, 97, 13], dtype=jnp.int32)
    mask2 = (jnp.arange(S2)[None, :] < lengths2[:, None]).astype(jnp.float32)

    out2 = sentence_encoder_pooling(tok2, mask2,
                                    do_cls_tokens=True, do_max_tokens=True,
                                    do_sqrt_tokens=False, do_mean_tokens=True,
                                    block_s=128)          # grid = (1, 2)
    out2 = jax.block_until_ready(out2)
    ref2 = _reference(tok2, mask2, do_cls=True, do_max=True,
                      do_sqrt=False, do_mean=True)
    assert out2.shape == (B2, 3 * H2), out2.shape
    assert jnp.allclose(out2, ref2, atol=1e-4, rtol=1e-5)

    print("KERNEL_OK")
</pallas_src>

<mosaic_0001>
module attributes {stable_mosaic.version = 11 : i64} {
  func.func @_pooling_kernel(%arg0: i32, %arg1: i32, %arg2: memref<2x8x32xf32, #tpu.memory_space<vmem>>, %arg3: memref<2x8x1xf32, #tpu.memory_space<vmem>>, %arg4: memref<2x1x32xf32, #tpu.memory_space<vmem>>, %arg5: memref<2x32xf32, #tpu.memory_space<vmem>>, %arg6: memref<2x32xf32, #tpu.memory_space<vmem>>, %arg7: memref<2x1xf32, #tpu.memory_space<vmem>>) attributes {dimension_semantics = [#tpu.dimension_semantics<parallel>, #tpu.dimension_semantics<arbitrary>], iteration_bounds = array<i64: 1, 1>, scalar_prefetch = 0 : i64, scratch_operands = 3 : i64, tpu.core_type = #tpu.core_type<tc>, window_params = [{transform_indices = @transform_0, window_bounds = array<i64: 2, 8, 32>}, {transform_indices = @transform_1, window_bounds = array<i64: 2, 8, 1>}, {transform_indices = @transform_2, window_bounds = array<i64: 2, 1, 32>}]} {
    %c0 = arith.constant 0 : index
    %c0_0 = arith.constant 0 : index
    %c0_1 = arith.constant 0 : index
    %0 = vector.load %arg2[%c0, %c0_0, %c0_1] : memref<2x8x32xf32, #tpu.memory_space<vmem>>, vector<2x8x32xf32>
    %c0_2 = arith.constant 0 : index
    %c0_3 = arith.constant 0 : index
    %c0_4 = arith.constant 0 : index
    %1 = vector.load %arg3[%c0_2, %c0_3, %c0_4] : memref<2x8x1xf32, #tpu.memory_space<vmem>>, vector<2x8x1xf32>
    %c0_i32 = arith.constant 0 : i32
    %2 = arith.cmpi eq, %arg1, %c0_i32 : i32
    %3 = arith.extui %2 : i1 to i32
    %c0_i32_5 = arith.constant 0 : i32
    %4 = arith.cmpi ne, %3, %c0_i32_5 : i32
    scf.if %4 {
      %cst_17 = arith.constant 0.000000e+00 : f32
      %18 = vector.broadcast %cst_17 : f32 to vector<2x32xf32>
      %c0_18 = arith.constant 0 : index
      %c0_19 = arith.constant 0 : index
      %19 = vector.load %arg6[%c0_18, %c0_19] : memref<2x32xf32, #tpu.memory_space<vmem>>, vector<2x32xf32>
      tpu.vector_store %arg6[%c0_18, %c0_19], %18 {strides = array<i32>} : memref<2x32xf32, #tpu.memory_space<vmem>>, vector<2x32xf32>,
      %cst_20 = arith.constant 0.000000e+00 : f32
      %20 = vector.broadcast %cst_20 : f32 to vector<2x1xf32>
      %c0_21 = arith.constant 0 : index
      %c0_22 = arith.constant 0 : index
      %21 = vector.load %arg7[%c0_21, %c0_22] : memref<2x1xf32, #tpu.memory_space<vmem>>, vector<2x1xf32>
      tpu.vector_store %arg7[%c0_21, %c0_22], %20 {strides = array<i32>} : memref<2x1xf32, #tpu.memory_space<vmem>>, vector<2x1xf32>,
    } else {
    }
    %c0_6 = arith.constant 0 : index
    %c0_7 = arith.constant 0 : index
    %5 = vector.load %arg6[%c0_6, %c0_7] : memref<2x32xf32, #tpu.memory_space<vmem>>, vector<2x32xf32>
    %6 = vector.broadcast %1 : vector<2x8x1xf32> to vector<2x8x32xf32>
    %7 = arith.mulf %0, %6 : vector<2x8x32xf32>
    %cst = arith.constant dense<0.000000e+00> : vector<2x32xf32>
    %8 = vector.multi_reduction <add>, %7, %cst [1] : vector<2x8x32xf32> to vector<2x32xf32>
    %9 = arith.addf %5, %8 : vector<2x32xf32>
    %c0_8 = arith.constant 0 : index
    %c0_9 = arith.constant 0 : index
    %10 = vector.load %arg6[%c0_8, %c0_9] : memref<2x32xf32, #tpu.memory_space<vmem>>, vector<2x32xf32>
    tpu.vector_store %arg6[%c0_8, %c0_9], %9 {strides = array<i32>} : memref<2x32xf32, #tpu.memory_space<vmem>>, vector<2x32xf32>,
    %c0_10 = arith.constant 0 : index
    %c0_11 = arith.constant 0 : index
    %11 = vector.load %arg7[%c0_10, %c0_11] : memref<2x1xf32, #tpu.memory_space<vmem>>, vector<2x1xf32>
    %cst_12 = arith.constant dense<0.000000e+00> : vector<2x1xf32>
    %12 = vector.multi_reduction <add>, %1, %cst_12 [1] : vector<2x8x1xf32> to vector<2x1xf32>
    %13 = arith.addf %11, %12 : vector<2x1xf32>
    %c0_13 = arith.constant 0 : index
    %c0_14 = arith.constant 0 : index
    %14 = vector.load %arg7[%c0_13, %c0_14] : memref<2x1xf32, #tpu.memory_space<vmem>>, vector<2x1xf32>
    tpu.vector_store %arg7[%c0_13, %c0_14], %13 {strides = array<i32>} : memref<2x1xf32, #tpu.memory_space<vmem>>, vector<2x1xf32>,
    %c0_i32_15 = arith.constant 0 : i32
    %15 = arith.cmpi eq, %arg1, %c0_i32_15 : i32
    %16 = arith.extui %15 : i1 to i32
    %c0_i32_16 = arith.constant 0 : i32
    %17 = arith.cmpi ne, %16, %c0_i32_16 : i32
    scf.if %17 {
      %c0_17 = arith.constant 0 : index
      %c0_18 = arith.constant 0 : index
      %18 = vector.load %arg7[%c0_17, %c0_18] : memref<2x1xf32, #tpu.memory_space<vmem>>, vector<2x1xf32>
      %cst_19 = arith.constant 9.99999971E-10 : f32
      %19 = vector.broadcast %cst_19 : f32 to vector<2x1xf32>
      %20 = arith.maximumf %18, %19 : vector<2x1xf32>
      %c0_20 = arith.constant 0 : index
      %c0_21 = arith.constant 0 : index
      %21 = vector.load %arg6[%c0_20, %c0_21] : memref<2x32xf32, #tpu.memory_space<vmem>>, vector<2x32xf32>
      %22 = vector.broadcast %20 : vector<2x1xf32> to vector<2x32xf32>
      %23 = arith.divf %21, %22 : vector<2x32xf32>
      %24 = vector.shape_cast %23 : vector<2x32xf32> to vector<2x1x32xf32>
      %c0_22 = arith.constant 0 : index
      %c0_23 = arith.constant 0 : index
      %c0_24 = arith.constant 0 : index
      %25 = vector.load %arg4[%c0_22, %c0_23, %c0_24] : memref<2x1x32xf32, #tpu.memory_space<vmem>>, vector<2x1x32xf32>
      tpu.vector_store %arg4[%c0_22, %c0_23, %c0_24], %24 {strides = array<i32>} : memref<2x1x32xf32, #tpu.memory_space<vmem>>, vector<2x1x32xf32>,
    } else {
    }
    return
  }
  func.func @transform_0(%arg0: i32, %arg1: i32) -> (i32, i32, i32) {
    %c0_i32 = arith.constant 0 : i32
    %c0_i32_0 = arith.constant 0 : i32
    return %arg0, %arg1, %c0_i32 : i32, i32, i32
  }
  func.func @transform_1(%arg0: i32, %arg1: i32) -> (i32, i32, i32) {
    %c0_i32 = arith.constant 0 : i32
    %c0_i32_0 = arith.constant 0 : i32
    return %arg0, %arg1, %c0_i32 : i32, i32, i32
  }
  func.func @transform_2(%arg0: i32, %arg1: i32) -> (i32, i32, i32) {
    %c0_i32 = arith.constant 0 : i32
    %c0_i32_0 = arith.constant 0 : i32
    %c0_i32_1 = arith.constant 0 : i32
    return %arg0, %c0_i32, %c0_i32_0 : i32, i32, i32
  }
}

</mosaic_0001>

<llo_original>
// kernel: tpu_custom_call.1
$region0: #{tpu_custom_call.1}
  #allocation0 [shape = 'u32[]', space=smem, size = 0x4, offset = 0x4, fixed_abs, tag = 'smem constant byte address 0x4 - core index']
  #allocation1 [shape = 'u32[144,128]{1,0:T(1,128)}', space=vmem, size = 0x12000, scoped, tag = 'internal scratch']
  #allocation2 [shape = 'f32[2,32]{1,0:T(2,128)}', space=vmem, size = 0x400, scoped, tag = 'scratch operand']
  #allocation3 [shape = 'f32[2,32]{1,0:T(2,128)}', space=vmem, size = 0x400, scoped, tag = 'scratch operand']
  #allocation4 [shape = 'f32[2,1]{1,0:T(2,128)}', space=vmem, size = 0x400, scoped, tag = 'scratch operand']
  %s0 = inlined_call_operand.vmem [shape: f32[2,8,32], index: 0, kind: input, shape index: {}]
  %s1 = inlined_call_operand.vmem [shape: f32[2,8,1], index: 1, kind: input, shape index: {}]
  %s2 = inlined_call_operand.hbm [shape: f32[2,1,32], index: 2, kind: output, shape index: {}]
  %s3 = sld [smem:[#allocation0]]
  $region26: #{tpu_custom_call.1} parent=0
    _
  %s5 = ssub.s32 1, %s3
  %s6 = scalar_select 0, %s5, %s3
  $region1: #{tpu_custom_call.1} parent=0
    #allocation5 [shape = 'u8[1024]{0}', space=vmem, size = 0x400, scoped, tag = 'output window, operand 0, single buffered']
    #allocation6 [shape = 's32[1]{0}', space=sflag, size = 0x4, scoped, tag = 'scoped memory for tpu_custom_call.1']
    %7 = vsyncpa [#allocation6], 0
    // Predicated region
    $region2: #{tpu_custom_call.1} parent=1 // pred_check
      _
    $region3: #{tpu_custom_call.1} parent=1 // pred_check_branch
      %9 = sbr.rel (0) target = $region5
    $region4: #{tpu_custom_call.1} parent=1 // pred_region
      _
    $region5: #{tpu_custom_call.1} parent=1 // pred_fallthru
      _
    // Predicated region
    $region6: #{tpu_custom_call.1} parent=1 // pred_check
      _
    $region7: #{tpu_custom_call.1} parent=1 // pred_check_branch
      %11 = sbr.rel (0) target = $region9
    $region8: #{tpu_custom_call.1} parent=1 // pred_region
      _
    $region9: #{tpu_custom_call.1} parent=1 // pred_fallthru
      _
    %v12 = vld [vmem:[%s0] sm:$0xff]
    %v13 = vld [vmem:[%s0 + $0x8] sm:$0xff]
    %v14 = vld [vmem:[%s1] sm:$0xff]
    %v15 = vld [vmem:[%s1 + $0x8] sm:$0xff]
    %p16 = scmp.eq.s32.totalorder 0, 0
    // Predicated region
    $region10: #{tpu_custom_call.1} parent=1 // pred_check
      %p17 = pneg %p16
    $region11: #{tpu_custom_call.1} parent=1 // pred_check_branch
      %19 = sbr.rel (%p17) target = $region13
    $region12: #{tpu_custom_call.1} parent=1 // pred_region
      %vm20 = vcmask 254976
      %21 = vst.msk [vmem:[#allocation3] sm:$0x3] %vm20, 0.0
      %vm22 = vcmask 1024
      %23 = vst.msk [vmem:[#allocation4] sm:$0x3] %vm22, 0.0
    $region13: #{tpu_custom_call.1} parent=1 // pred_fallthru
      _
    %v24 = vld [vmem:[#allocation3] sm:$0x3]
    %26 = vset.pattern.permute.xlu0 0
    %27 = vperm.xlu0 %26, %v14
    %v28 = vpop.permute.xlu0 %27
    %31 = vset.pattern.permute.xlu0 0
    %32 = vperm.xlu0 %31, %v15
    %v33 = vpop.permute.xlu0 %32
    %v35 = vmul.f32 %v12, %v28
    %v36 = vmul.f32 %v13, %v33
    %vm37 = vcmask 261120
    %v38 = vsel %vm37, %v35, 0.0
    %v39 = vrot.slane %v38, 4
    %v40 = vadd.f32 %v38, %v39
    %v41 = vrot.slane %v40, 2
    %v42 = vadd.f32 %v40, %v41
    %v43 = vrot.slane %v42, 1
    %v44 = vadd.f32 %v42, %v43
    %v45 = vsel %vm37, %v36, 0.0
    %v46 = vrot.slane %v45, 4
    %v47 = vadd.f32 %v45, %v46
    %v48 = vrot.slane %v47, 2
    %v49 = vadd.f32 %v47, %v48
    %v50 = vrot.slane %v49, 1
    %v51 = vadd.f32 %v49, %v50
    %vm54 = vcmask 1041409
    %v55 = vsel %vm54, %v51, %v44
    %v57 = vadd.f32 %v24, %v55
    %vm58 = vcmask 254976
    %59 = vst.msk [vmem:[#allocation3] sm:$0x3] %vm58, %v57
    %v60 = vld [vmem:[#allocation4] sm:$0x3]
    %vm61 = vcmask 7168
    %v62 = vsel %vm61, %v14, 0.0
    %v63 = vrot.slane %v62, 4
    %v64 = vadd.f32 %v62, %v63
    %v65 = vrot.slane %v64, 2
    %v66 = vadd.f32 %v64, %v65
    %v67 = vrot.slane %v66, 1
    %v68 = vadd.f32 %v66, %v67
    %v69 = vsel %vm61, %v15, 0.0
    %v70 = vrot.slane %v69, 4
    %v71 = vadd.f32 %v69, %v70
    %v72 = vrot.slane %v71, 2
    %v73 = vadd.f32 %v71, %v72
    %v74 = vrot.slane %v73, 1
    %v75 = vadd.f32 %v73, %v74
    %v78 = vsel %vm54, %v75, %v68
    %v80 = vadd.f32 %v60, %v78
    %vm81 = vcmask 1024
    %82 = vst.msk [vmem:[#allocation4] sm:$0x3] %vm81, %v80
    // Predicated region
    $region14: #{tpu_custom_call.1} parent=1 // pred_check
      %p83 = pneg %p16
    $region15: #{tpu_custom_call.1} parent=1 // pred_check_branch
      %85 = sbr.rel (%p83) target = $region17
    $region16: #{tpu_custom_call.1} parent=1 // pred_region
      %v86 = vld [vmem:[#allocation4] sm:$0x3]
      %v87 = vmax.f32 %v86, 1e-09
      %v88 = vld [vmem:[#allocation3] sm:$0x3]
      %90 = vset.pattern.permute.xlu0 0
      %91 = vperm.xlu0 %90, %v87
      %v92 = vpop.permute.xlu0 %91
      %v94 = vrcp.pop %v92
      %v95 = vmul.f32 %v88, %v94
      %v98 = vunpack.c.l.s4 1966171168
      %v99 = vunpack.c.0.s8 %v98
      %v100 = vlaneseq
      %v101 = vshrl.u32 %v100, 7
      %v102 = vsub.s32 %v99, %v101
      %v103 = vrot.slane %v95, %v102
      %v104 = vcombine.high %v103, %v103
      %v106 = vunpack.c.l.s4 1966171168
      %v107 = vunpack.c.0.s8 %v106
      %v108 = vlaneseq
      %v109 = vshrl.u32 %v108, 7
      %v110 = vsub.s32 %v107, %v109
      %v111 = vrot.slane %v103, %v110
      %v113 = vunpack.c.l.s4 1966171168
      %v114 = vunpack.c.0.s8 %v113
      %v115 = vlaneseq
      %v116 = vshrl.u32 %v115, 7
      %v117 = vsub.s32 %v114, %v116
      %v118 = vrot.slane %v104, %v117
      %vm121 = vcmask 253952
      %122 = vst.msk [vmem:[#allocation5] sm:$0x1] %vm121, %v111
      %123 = vst.msk [vmem:[#allocation5 + $0x1] sm:$0x1] %vm121, %v118
    $region17: #{tpu_custom_call.1} parent=1 // pred_fallthru
      _
    // Predicated region
    $region18: #{tpu_custom_call.1} parent=1 // pred_check
      _
    $region19: #{tpu_custom_call.1} parent=1 // pred_check_branch
      %125 = sbr.rel (0) target = $region21
    $region20: #{tpu_custom_call.1} parent=1 // pred_region
      %s127 = ssub.s32 32, 32
      %128 = vsyncadd [#allocation6], %s127
      %s129 = sshll.u32 [#allocation5], 4
      %s130 = int_to_ptr.vmem [resolvable:$true] %s129
      %135 = dma.vmem_to_hbm [thread:$0]  %s130, 32, %s2, [#allocation6], 16, 16, 1
    $region21: #{tpu_custom_call.1} parent=1 // pred_fallthru
      _
    // Predicated region
    $region22: #{tpu_custom_call.1} parent=1 // pred_check
      _
    $region23: #{tpu_custom_call.1} parent=1 // pred_check_branch
      %137 = sbr.rel (0) target = $region25
    $region24: #{tpu_custom_call.1} parent=1 // pred_region
      %138 = dma.done [#allocation6], 32
    $region25: #{tpu_custom_call.1} parent=1 // pred_fallthru
      _
    %139 = vsyncpa [#allocation6], 1

</llo_original>
